<compile_context>
chip_gen: v7x
topology: tpu7x:2x2x1
jax: 0.10.0
libtpu: 0.0.40
codegen_flags: <defaults>
</compile_context>

<pallas_src>
import functools

import jax
import jax.numpy as jnp
from jax import lax
from jax.experimental import pallas as pl
from jax.experimental.pallas import tpu as pltpu


# ---------------------------------------------------------------------------
# Hardware-aware parameters.
# ---------------------------------------------------------------------------
def _tpu_params():
    """Return (target_tile_bytes, vmem_capacity_bytes, num_tensorcores)."""
    target = 4 * 1024 * 1024        # v6e-ish default
    vmem_cap = 64 * 1024 * 1024     # conservative (v7x per-TC physical VMEM)
    num_cores = 1
    try:
        info = pltpu.get_tpu_info()
        vmem_cap = int(getattr(info, "vmem_capacity_bytes", vmem_cap))
    except Exception:               # non-TPU backend / API unavailable
        pass
    try:
        kind = jax.devices()[0].device_kind.lower()
    except Exception:
        kind = ""
    if "v7" in kind:
        target = 8 * 1024 * 1024    # 3.2 TB/s HBM: amortize ~0.35us/step overhead
        num_cores = 2               # 2 TensorCores per chip share the grid
    elif "v6" in kind:
        target = 4 * 1024 * 1024
    elif "v5" in kind:
        target = 2 * 1024 * 1024    # v5e scoped-VMEM default is only 16 MiB
    return target, vmem_cap, num_cores


def _choose_tiles(B, N, D, itemsize, target_bytes, num_cores):
    """Pick (tb, tn, td) for the (tb, tn, td) input block.

    Preference order: whole D (fully contiguous per-row DMA) > whole N
    (single-pass mean) > shrink batch tile > tile N (accumulator path) >
    tile D (last resort, 128-lane multiples).
    Block-shape legality: tn is a multiple of 8 or == N; td is a multiple of
    128 or == D; tb is unconstrained (not a sublane dim of either block).
    """
    td = D
    tn = N
    row_bytes = N * D * itemsize

    # 1) Keep the whole (N, D) slab per example; shrink the batch tile toward 1.
    tb = int(max(1, min(B, target_bytes // max(1, row_bytes))))

    # 2) A single example is still too big: tile num_seq (multiple of 8).
    if tb == 1 and row_bytes > target_bytes and N > 8:
        per_row = D * itemsize
        tn = (target_bytes // max(1, per_row)) // 8 * 8
        tn = int(max(8, min(tn, N)))

    # 3) Even one (1, tn, D) chunk is too big (enormous D): tile features.
    #    TODO(synk): could bump the minimum to 256 lanes (>=1 KiB rows) per the
    #    review; this last-resort path is essentially never hit in practice.
    if tb == 1 and tn * D * itemsize > target_bytes and D > 128:
        td = (target_bytes // max(1, tn * itemsize)) // 128 * 128
        td = int(max(128, min(td, D)))

    # 4) Keep enough *parallel* grid steps to feed all TensorCores / keep the
    #    pipeline busy, without dropping below ~512 KiB per step.
    min_steps = 4 * num_cores
    min_tile_bytes = 512 * 1024
    while (tb > 1
           and pl.cdiv(B, tb) * pl.cdiv(D, td) < min_steps
           and tb * tn * td * itemsize > min_tile_bytes):
        tb = max(1, tb // 2)

    return int(tb), int(tn), int(td)


# ---------------------------------------------------------------------------
# Kernel.
# ---------------------------------------------------------------------------
def _first_last_avg_kernel(x_ref, o_ref, *scratch, n_total, tn, mask_n):
    """x_ref: (tb, tn, td) input block.  o_ref: (tb, 3, td) resident output block.

    Grid = (batch tiles, feature tiles, num_seq tiles); the num_seq axis (last,
    "arbitrary") reduces into an f32 VMEM accumulator when it has > 1 step.
    """
    x = x_ref[...]
    if mask_n:
        # The last num_seq block may be ragged; its padded rows hold garbage,
        # so mask them out of the sum.  (B/D padding needs no masking: those
        # output positions are write-masked by Pallas and never hit HBM.)
        k = pl.program_id(2)
        valid = n_total - k * tn
        row = lax.broadcasted_iota(jnp.int32, (tn, 1), 0)
        x = jnp.where(row < valid, x, 0)

    # f32 accumulation; single cast to the output dtype at the end.
    partial = jnp.sum(x, axis=1, dtype=jnp.float32)          # (tb, td)
    inv_n = 1.0 / n_total

    if not scratch:
        # Whole num_seq dim in one block: single-pass store.
        first = x_ref[:, 0, :]
        o_ref[:, 0, :] = first                                # first pooling
        o_ref[:, 1, :] = first                                # "last" (module quirk: row 0)
        o_ref[:, 2, :] = (partial * inv_n).astype(o_ref.dtype)
    else:
        acc_ref, = scratch
        k = pl.program_id(2)

        @pl.when(k == 0)
        def _():
            acc_ref[...] = partial
            first = x_ref[:, 0, :]                            # row 0 lives in block k==0
            o_ref[:, 0, :] = first
            o_ref[:, 1, :] = first

        @pl.when(k > 0)
        def _():
            acc_ref[...] += partial

        @pl.when(k == pl.num_programs(2) - 1)
        def _():
            o_ref[:, 2, :] = (acc_ref[...] * inv_n).astype(o_ref.dtype)


# ---------------------------------------------------------------------------
# Wrapper.
# ---------------------------------------------------------------------------
def first_last_avg_poolings(hidden_state: jax.Array,
                            target_tile_bytes: int | None = None) -> jax.Array:
    """Pallas equivalent of FirstLastAvgPoolings(dim=1).forward.

    hidden_state: (B, N, D) -> (B, 3, D) with rows [first, last, avg].
    """
    B, N, D = hidden_state.shape
    dtype = hidden_state.dtype
    itemsize = jnp.dtype(dtype).itemsize

    target, vmem_cap, num_cores = _tpu_params()
    if target_tile_bytes is not None:
        target = int(target_tile_bytes)

    tb, tn, td = _choose_tiles(B, N, D, itemsize, target, num_cores)
    nb, nd, nk = pl.cdiv(B, tb), pl.cdiv(D, td), pl.cdiv(N, tn)
    mask_n = (N % tn) != 0

    kernel = functools.partial(_first_last_avg_kernel,
                               n_total=N, tn=tn, mask_n=mask_n)

    scratch_shapes = []
    scratch_bytes = 0
    if nk > 1:
        scratch_shapes = [pltpu.VMEM((tb, td), jnp.float32)]
        scratch_bytes = tb * td * 4

    # Explicit scoped-VMEM budget: double-buffered input + output + scratch,
    # with headroom; clamped to the chip's physical VMEM.
    in_tile = tb * tn * td * itemsize
    out_tile = tb * 3 * td * itemsize
    needed = 2 * in_tile + 2 * out_tile + scratch_bytes + (1 << 20)
    vmem_limit = int(min(int(vmem_cap * 0.9), max(32 << 20, 2 * needed)))

    return pl.pallas_call(
        kernel,
        out_shape=jax.ShapeDtypeStruct((B, 3, D), dtype),
        grid=(nb, nd, nk),
        in_specs=[pl.BlockSpec((tb, tn, td), lambda bi, di, ki: (bi, ki, di))],
        out_specs=pl.BlockSpec((tb, 3, td), lambda bi, di, ki: (bi, 0, di)),
        scratch_shapes=tuple(scratch_shapes),
        compiler_params=pltpu.CompilerParams(
            dimension_semantics=("parallel", "parallel", "arbitrary"),
            vmem_limit_bytes=vmem_limit,
        ),
    )(hidden_state)


# ---------------------------------------------------------------------------
# Reference + tests.
# ---------------------------------------------------------------------------
def _reference(hidden_state: jax.Array) -> jax.Array:
    # Pure-JAX reference mirroring the PyTorch forward exactly.
    first = hidden_state[:, 0, :]
    last = hidden_state[:, 1 - 1, :]  # lengths == dim == 1 quirk of the module
    avg = jnp.mean(hidden_state.astype(jnp.float32), axis=1).astype(hidden_state.dtype)
    return jnp.stack([first, last, avg], axis=1)


def _check(x, out, name, atol=1e-5, rtol=1e-5):
    ref = _reference(x)
    assert out.shape == ref.shape, (name, out.shape, ref.shape)
    assert jnp.allclose(out, ref, atol=atol, rtol=rtol), f"mismatch vs reference ({name})"


if __name__ == "__main__":
    key = jax.random.PRNGKey(0)
    k0, k1, k2, k3 = jax.random.split(key, 4)

    # 1) Small shape consistent with the module (batch, num_seq, seq_len);
    #    single-block fast path.
    B, N, D = 2, 8, 32
    x = jax.random.normal(k0, (B, N, D), dtype=jnp.float32)
    out = jax.block_until_ready(first_last_avg_poolings(x))
    _check(x, out, "small")

    # 2) Force the num_seq-tiled accumulator path with a ragged last N block
    #    (target override -> tb=1, tn=16, nk=2, in-kernel N mask).
    B2, N2, D2 = 3, 24, 256
    x2 = jax.random.normal(k1, (B2, N2, D2), dtype=jnp.float32)
    out2 = jax.block_until_ready(first_last_avg_poolings(x2, target_tile_bytes=16 * 1024))
    _check(x2, out2, "n-tiled")

    # 3) Ragged batch blocks (B=5, tb=2 -> cdiv grid with masked edge block).
    B3, N3, D3 = 5, 8, 128
    x3 = jax.random.normal(k2, (B3, N3, D3), dtype=jnp.float32)
    out3 = jax.block_until_ready(first_last_avg_poolings(x3, target_tile_bytes=8 * 1024))
    _check(x3, out3, "ragged-batch")

    # 4) Non-(8,128)-aligned N and D kept whole in the block (full-extent dims).
    B4, N4, D4 = 3, 10, 40
    x4 = jax.random.normal(k3, (B4, N4, D4), dtype=jnp.float32)
    out4 = jax.block_until_ready(first_last_avg_poolings(x4))
    _check(x4, out4, "unaligned")

    print("KERNEL_OK")
</pallas_src>

<mosaic_0001>
module attributes {stable_mosaic.version = 11 : i64} {
  func.func @_first_last_avg_kernel(%arg0: i32, %arg1: i32, %arg2: i32, %arg3: memref<2x8x32xf32, #tpu.memory_space<vmem>>, %arg4: memref<2x3x32xf32, #tpu.memory_space<vmem>>) attributes {dimension_semantics = [#tpu.dimension_semantics<parallel>, #tpu.dimension_semantics<parallel>, #tpu.dimension_semantics<arbitrary>], iteration_bounds = array<i64: 1, 1, 1>, scalar_prefetch = 0 : i64, scratch_operands = 0 : i64, tpu.core_type = #tpu.core_type<tc>, window_params = [{transform_indices = @transform_0, window_bounds = array<i64: 2, 8, 32>}, {transform_indices = @transform_1, window_bounds = array<i64: 2, 3, 32>}]} {
    %c0 = arith.constant 0 : index
    %c0_0 = arith.constant 0 : index
    %c0_1 = arith.constant 0 : index
    %0 = vector.load %arg3[%c0, %c0_0, %c0_1] : memref<2x8x32xf32, #tpu.memory_space<vmem>>, vector<2x8x32xf32>
    %cst = arith.constant dense<0.000000e+00> : vector<2x32xf32>
    %1 = vector.multi_reduction <add>, %0, %cst [1] : vector<2x8x32xf32> to vector<2x32xf32>
    %c0_2 = arith.constant 0 : index
    %c0_3 = arith.constant 0 : index
    %c0_4 = arith.constant 0 : index
    %2 = vector.load %arg3[%c0_2, %c0_3, %c0_4] : memref<2x8x32xf32, #tpu.memory_space<vmem>>, vector<2x1x32xf32>
    %3 = vector.shape_cast %2 : vector<2x1x32xf32> to vector<2x32xf32>
    %c0_5 = arith.constant 0 : index
    %c0_6 = arith.constant 0 : index
    %c0_7 = arith.constant 0 : index
    %4 = vector.load %arg4[%c0_5, %c0_6, %c0_7] : memref<2x3x32xf32, #tpu.memory_space<vmem>>, vector<2x1x32xf32>
    %5 = vector.shape_cast %4 : vector<2x1x32xf32> to vector<2x32xf32>
    %6 = vector.shape_cast %3 : vector<2x32xf32> to vector<2x1x32xf32>
    tpu.vector_store %arg4[%c0_5, %c0_6, %c0_7], %6 {strides = array<i32>} : memref<2x3x32xf32, #tpu.memory_space<vmem>>, vector<2x1x32xf32>,
    %c0_8 = arith.constant 0 : index
    %c1 = arith.constant 1 : index
    %c0_9 = arith.constant 0 : index
    %7 = vector.load %arg4[%c0_8, %c1, %c0_9] : memref<2x3x32xf32, #tpu.memory_space<vmem>>, vector<2x1x32xf32>
    %8 = vector.shape_cast %7 : vector<2x1x32xf32> to vector<2x32xf32>
    %9 = vector.shape_cast %3 : vector<2x32xf32> to vector<2x1x32xf32>
    tpu.vector_store %arg4[%c0_8, %c1, %c0_9], %9 {strides = array<i32>} : memref<2x3x32xf32, #tpu.memory_space<vmem>>, vector<2x1x32xf32>,
    %cst_10 = arith.constant 1.250000e-01 : f32
    %10 = vector.broadcast %cst_10 : f32 to vector<2x32xf32>
    %11 = arith.mulf %1, %10 : vector<2x32xf32>
    %c0_11 = arith.constant 0 : index
    %c2 = arith.constant 2 : index
    %c0_12 = arith.constant 0 : index
    %12 = vector.load %arg4[%c0_11, %c2, %c0_12] : memref<2x3x32xf32, #tpu.memory_space<vmem>>, vector<2x1x32xf32>
    %13 = vector.shape_cast %12 : vector<2x1x32xf32> to vector<2x32xf32>
    %14 = vector.shape_cast %11 : vector<2x32xf32> to vector<2x1x32xf32>
    tpu.vector_store %arg4[%c0_11, %c2, %c0_12], %14 {strides = array<i32>} : memref<2x3x32xf32, #tpu.memory_space<vmem>>, vector<2x1x32xf32>,
    return
  }
  func.func @transform_0(%arg0: i32, %arg1: i32, %arg2: i32) -> (i32, i32, i32) {
    %c0_i32 = arith.constant 0 : i32
    return %arg0, %arg2, %arg1 : i32, i32, i32
  }
  func.func @transform_1(%arg0: i32, %arg1: i32, %arg2: i32) -> (i32, i32, i32) {
    %c0_i32 = arith.constant 0 : i32
    %c0_i32_0 = arith.constant 0 : i32
    return %arg0, %c0_i32, %arg1 : i32, i32, i32
  }
}

</mosaic_0001>

<llo_original>
// kernel: tpu_custom_call.1
$region0: #{tpu_custom_call.1}
  #allocation0 [shape = 'u32[]', space=smem, size = 0x4, offset = 0x4, fixed_abs, tag = 'smem constant byte address 0x4 - core index']
  #allocation1 [shape = 'u32[144,128]{1,0:T(1,128)}', space=vmem, size = 0x12000, scoped, tag = 'internal scratch']
  %s0 = inlined_call_operand.hbm [shape: f32[2,8,32], index: 0, kind: input, shape index: {}]
  %s1 = inlined_call_operand.vmem [shape: f32[2,3,32], index: 1, kind: output, shape index: {}]
  %s2 = sld [smem:[#allocation0]]
  $region18: #{tpu_custom_call.1} parent=0
    _
  %s4 = ssub.s32 1, %s2
  %s5 = scalar_select 0, %s4, %s2
  $region1: #{tpu_custom_call.1} parent=0
    #allocation2 [shape = 'u8[8192]{0}', space=vmem, size = 0x2000, scoped, tag = 'input window, operand 0, single buffered']
    #allocation3 [shape = 's32[1]{0}', space=sflag, size = 0x4, scoped, tag = 'scoped memory for tpu_custom_call.1']
    %6 = vsyncpa [#allocation3], 0
    // Predicated region
    $region2: #{tpu_custom_call.1} parent=1 // pred_check
      _
    $region3: #{tpu_custom_call.1} parent=1 // pred_check_branch
      %8 = sbr.rel (0) target = $region5
    $region4: #{tpu_custom_call.1} parent=1 // pred_region
      %s10 = ssub.s32 256, 256
      %11 = vsyncadd [#allocation3], %s10
      %s12 = sshll.u32 [#allocation2], 4
      %s13 = int_to_ptr.vmem [resolvable:$true] %s12
      %18 = dma.hbm_to_vmem [thread:$0]  %s0, 256, %s13, [#allocation3], 128, 128, 8
    $region5: #{tpu_custom_call.1} parent=1 // pred_fallthru
      _
    // Predicated region
    $region6: #{tpu_custom_call.1} parent=1 // pred_check
      _
    $region7: #{tpu_custom_call.1} parent=1 // pred_check_branch
      %20 = sbr.rel (0) target = $region9
    $region8: #{tpu_custom_call.1} parent=1 // pred_region
      %21 = dma.done [#allocation3], 256
    $region9: #{tpu_custom_call.1} parent=1 // pred_fallthru
      _
    %v22 = vld [vmem:[#allocation2] sm:$0xff]
    %v23 = vld [vmem:[#allocation2 + $0x8] sm:$0xff]
    %vm24 = vcmask 261120
    %v25 = vsel %vm24, %v22, 0.0
    %v26 = vrot.slane %v25, 4
    %v27 = vadd.f32 %v25, %v26
    %v28 = vrot.slane %v27, 2
    %v29 = vadd.f32 %v27, %v28
    %v30 = vrot.slane %v29, 1
    %v31 = vadd.f32 %v29, %v30
    %v32 = vsel %vm24, %v23, 0.0
    %v33 = vrot.slane %v32, 4
    %v34 = vadd.f32 %v32, %v33
    %v35 = vrot.slane %v34, 2
    %v36 = vadd.f32 %v34, %v35
    %v37 = vrot.slane %v36, 1
    %v38 = vadd.f32 %v36, %v37
    %v39 = vld [vmem:[#allocation2] sm:$0x1]
    %v40 = vld [vmem:[#allocation2 + $0x8] sm:$0x1]
    %vm41 = vcmask 253952
    %42 = vst.msk [vmem:[%s1] sm:$0x1] %vm41, %v39
    %43 = vst.msk [vmem:[%s1 + $0x4] sm:$0x1] %vm41, %v40
    %44 = vst.msk [vmem:[%s1 + $0x1] sm:$0x1] %vm41, %v39
    %45 = vst.msk [vmem:[%s1 + $0x5] sm:$0x1] %vm41, %v40
    %v46 = vmul.f32 %v31, 0.125
    %v47 = vmul.f32 %v38, 0.125
    %48 = vst.msk [vmem:[%s1 + $0x2] sm:$0x1] %vm41, %v46
    %49 = vst.msk [vmem:[%s1 + $0x6] sm:$0x1] %vm41, %v47
    // Predicated region
    $region10: #{tpu_custom_call.1} parent=1 // pred_check
      _
    $region11: #{tpu_custom_call.1} parent=1 // pred_check_branch
      %51 = sbr.rel (0) target = $region13
    $region12: #{tpu_custom_call.1} parent=1 // pred_region
      _
    $region13: #{tpu_custom_call.1} parent=1 // pred_fallthru
      _
    // Predicated region
    $region14: #{tpu_custom_call.1} parent=1 // pred_check
      _
    $region15: #{tpu_custom_call.1} parent=1 // pred_check_branch
      %53 = sbr.rel (0) target = $region17
    $region16: #{tpu_custom_call.1} parent=1 // pred_region
      _
    $region17: #{tpu_custom_call.1} parent=1 // pred_fallthru
      _
    %54 = vsyncpa [#allocation3], 1

</llo_original>
